<compile_context>
chip_gen: v7x
topology: tpu7x:2x2x1
jax: 0.10.0
libtpu: 0.0.40
codegen_flags: <defaults>
</compile_context>

<pallas_src>
import jax
import jax.numpy as jnp
from jax.experimental import pallas as pl
from jax.experimental.pallas import tpu as pltpu


# ----------------------------- kernel -------------------------------------

_LANE_W = 512       # lane-dense last dim (multiple of 128)
_BLOCK_ROWS = 1024  # rows per grid step -> (1024, 512) f32 block = 2 MiB


def _neg_scale_kernel(neg_coeff_ref, g_ref, o_ref):
    # grad_input = grad_output * (-coeff)   (sign pre-folded into the scalar)
    scale = neg_coeff_ref[0].astype(o_ref.dtype)
    o_ref[...] = g_ref[...] * scale


def _neg_scale_pallas(g, coeff):
    """Compute -coeff * g with a tiled, pipelined Pallas kernel."""
    orig_shape = g.shape
    orig_dtype = g.dtype
    total = g.size
    lane_w = _LANE_W

    # Flatten to a lane-dense 2D slab; pad the tail up to a multiple of lane_w
    # so every row is a full, unmasked 512-wide lane vector.
    padded = ((total + lane_w - 1) // lane_w) * lane_w
    flat = g.reshape(-1)
    if padded != total:
        flat = jnp.pad(flat, (0, padded - total))
    rows = padded // lane_w
    g2d = flat.reshape(rows, lane_w)

    # Block rows: whole array if small, else 1024-row tiles (multiple of 8).
    bm = rows if rows < _BLOCK_ROWS else _BLOCK_ROWS
    grid = (pl.cdiv(rows, bm),)

    # Scalar goes to SMEM; fold the negation in on the host side.
    neg_coeff = (-jnp.asarray(coeff, dtype=jnp.float32)).reshape((1,))

    itemsize = jnp.dtype(orig_dtype).itemsize
    cost = pl.CostEstimate(
        flops=int(padded),                          # one mul per element
        transcendentals=0,
        bytes_accessed=int(2 * padded * itemsize),  # read g + write grad_in
    )

    out2d = pl.pallas_call(
        _neg_scale_kernel,
        out_shape=jax.ShapeDtypeStruct((rows, lane_w), orig_dtype),
        grid=grid,
        in_specs=[
            pl.BlockSpec(memory_space=pltpu.MemorySpace.SMEM),   # neg_coeff
            pl.BlockSpec((bm, lane_w), lambda i: (i, 0)),        # grad_output
        ],
        out_specs=pl.BlockSpec((bm, lane_w), lambda i: (i, 0)),
        input_output_aliases={1: 0},   # write grad_input in place of grad_output
        compiler_params=pltpu.CompilerParams(
            dimension_semantics=("parallel",),
        ),
        cost_estimate=cost,
    )(neg_coeff, g2d)

    out_flat = out2d.reshape(-1)
    if padded != total:
        out_flat = out_flat[:total]
    return out_flat.reshape(orig_shape)


# --------------------------- custom_vjp op ---------------------------------

@jax.custom_vjp
def gradient_reverse(x, coeff=1.0):
    # Forward is a pure identity: return x directly, no kernel launch.
    return x


def _grl_fwd(x, coeff):
    return x, jnp.asarray(coeff, dtype=jnp.float32)


def _grl_bwd(coeff, g):
    gx = _neg_scale_pallas(g, coeff)
    # Zero cotangent for coeff (it is treated as non-differentiable).
    return gx, jnp.zeros_like(coeff)


gradient_reverse.defvjp(_grl_fwd, _grl_bwd)


class GradientReverseLayer:
    """JAX/Pallas port of the PyTorch GradientReverseLayer (no parameters)."""

    def __call__(self, x, coeff=1.0):
        return gradient_reverse(x, coeff)


# ------------------------------- test ---------------------------------------

if __name__ == "__main__":
    key = jax.random.PRNGKey(0)
    # NCHW, matching typical conv-feature input to the PyTorch module.
    x = jax.random.normal(key, (2, 4, 16, 16), dtype=jnp.float32)

    layer = GradientReverseLayer()

    # Forward: identity (no kernel).
    y = layer(x, 1.0)
    jax.block_until_ready(y)
    assert y.shape == x.shape and y.dtype == x.dtype
    assert jnp.allclose(y, x), "forward must be identity"

    # Backward through the Pallas kernel (gradient reversal).
    coeff = 0.5
    loss_fn = lambda inp: jnp.sum(gradient_reverse(inp, coeff) * 2.0)
    gx = jax.grad(loss_fn)(x)
    jax.block_until_ready(gx)
    assert jnp.allclose(gx, -coeff * 2.0 * jnp.ones_like(x)), \
        "backward must be -coeff * grad"

    # Exercise the backward kernel directly as well.
    g = jax.random.normal(jax.random.PRNGKey(1), x.shape, dtype=jnp.float32)
    gi = _neg_scale_pallas(g, coeff)
    jax.block_until_ready(gi)
    assert jnp.allclose(gi, -coeff * g, rtol=1e-6, atol=1e-6)

    print("KERNEL_OK")
</pallas_src>

<mosaic_0001>
module attributes {stable_mosaic.version = 11 : i64} {
  func.func @_neg_scale_kernel(%arg0: i32, %arg1: memref<1xf32, #tpu.memory_space<smem>>, %arg2: memref<4x512xf32, #tpu.memory_space<vmem>>, %arg3: memref<4x512xf32, #tpu.memory_space<vmem>>) attributes {dimension_semantics = [#tpu.dimension_semantics<parallel>], iteration_bounds = array<i64: 1>, scalar_prefetch = 0 : i64, scratch_operands = 0 : i64, tpu.core_type = #tpu.core_type<tc>, window_params = [{transform_indices = @transform_0, window_bounds = array<i64: 1>}, {transform_indices = @transform_1, window_bounds = array<i64: 4, 512>}, {transform_indices = @transform_2, window_bounds = array<i64: 4, 512>}]} {
    %c0 = arith.constant 0 : index
    %0 = memref.load %arg1[%c0] : memref<1xf32, #tpu.memory_space<smem>>
    %c0_0 = arith.constant 0 : index
    %c0_1 = arith.constant 0 : index
    %1 = vector.load %arg2[%c0_0, %c0_1] : memref<4x512xf32, #tpu.memory_space<vmem>>, vector<4x512xf32>
    %2 = vector.broadcast %0 : f32 to vector<4x512xf32>
    %3 = arith.mulf %1, %2 : vector<4x512xf32>
    %c0_2 = arith.constant 0 : index
    %c0_3 = arith.constant 0 : index
    %4 = vector.load %arg3[%c0_2, %c0_3] : memref<4x512xf32, #tpu.memory_space<vmem>>, vector<4x512xf32>
    tpu.vector_store %arg3[%c0_2, %c0_3], %3 {strides = array<i32>} : memref<4x512xf32, #tpu.memory_space<vmem>>, vector<4x512xf32>,
    return
  }
  func.func @transform_0(%arg0: i32) -> i32 {
    %c0_i32 = arith.constant 0 : i32
    %c0_i32_0 = arith.constant 0 : i32
    return %c0_i32 : i32
  }
  func.func @transform_1(%arg0: i32) -> (i32, i32) {
    %c0_i32 = arith.constant 0 : i32
    %c0_i32_0 = arith.constant 0 : i32
    return %arg0, %c0_i32 : i32, i32
  }
  func.func @transform_2(%arg0: i32) -> (i32, i32) {
    %c0_i32 = arith.constant 0 : i32
    %c0_i32_0 = arith.constant 0 : i32
    return %arg0, %c0_i32 : i32, i32
  }
}

</mosaic_0001>

<llo_original>
// kernel: tpu_custom_call.1
$region0: #{tpu_custom_call.1}
  #allocation0 [shape = 'u32[]', space=smem, size = 0x4, offset = 0x4, fixed_abs, tag = 'smem constant byte address 0x4 - core index']
  #allocation1 [shape = 'u32[144,128]{1,0:T(1,128)}', space=vmem, size = 0x12000, scoped, tag = 'internal scratch']
  #allocation2 [shape = 'f32[1]{0:T(128)S(6)}', space=smem, size = 0x200, scoped, tag = 'scoped memory for tpu_custom_call.1']
  %s0 = inlined_call_operand.<no memory space> [shape: f32[1], index: 0, kind: input, shape index: {}]
  %s1 = inlined_call_operand.hbm [shape: f32[4,512], index: 1, kind: input, shape index: {}, may-alias: {1,2}]
  %s2 = inlined_call_operand.hbm [shape: f32[4,512], index: 2, kind: output, shape index: {}, may-alias: {1,2}]
  %s3 = sld [smem:[#allocation0]]
  $region22: #{tpu_custom_call.1} parent=0
    _
  %s5 = ssub.s32 1, %s3
  %s6 = scalar_select 0, %s5, %s3
  %7 = sst [smem:[#allocation2]] %s0
  $region1: #{tpu_custom_call.1} parent=0
    #allocation3 [shape = 'u8[8192]{0}', space=vmem, size = 0x2000, scoped, tag = 'input window, operand 1, single buffered']
    #allocation4 [shape = 's32[1]{0}', space=sflag, size = 0x4, scoped, tag = 'scoped memory for tpu_custom_call.1']
    #allocation5 [shape = 's32[1]{0}', space=sflag, size = 0x4, scoped, tag = 'scoped memory for tpu_custom_call.1']
    #allocation6 [shape = 'u8[8192]{0}', space=vmem, size = 0x2000, scoped, tag = 'output window, operand 0, single buffered']
    %8 = vsyncpa [#allocation4], 0
    %9 = vsyncpa [#allocation5], 0
    // Predicated region
    $region2: #{tpu_custom_call.1} parent=1 // pred_check
      _
    $region3: #{tpu_custom_call.1} parent=1 // pred_check_branch
      %11 = sbr.rel (0) target = $region5
    $region4: #{tpu_custom_call.1} parent=1 // pred_region
      _
    $region5: #{tpu_custom_call.1} parent=1 // pred_fallthru
      _
    // Predicated region
    $region6: #{tpu_custom_call.1} parent=1 // pred_check
      _
    $region7: #{tpu_custom_call.1} parent=1 // pred_check_branch
      %13 = sbr.rel (0) target = $region9
    $region8: #{tpu_custom_call.1} parent=1 // pred_region
      %s15 = ssub.s32 256, 256
      %16 = vsyncadd [#allocation4], %s15
      %s18 = sshll.u32 [#allocation3], 4
      %s19 = int_to_ptr.vmem [resolvable:$true] %s18
      %21 = dma.hbm_to_vmem [thread:$0]  %s1, 256, %s19, [#allocation4]
    $region9: #{tpu_custom_call.1} parent=1 // pred_fallthru
      _
    // Predicated region
    $region10: #{tpu_custom_call.1} parent=1 // pred_check
      _
    $region11: #{tpu_custom_call.1} parent=1 // pred_check_branch
      %23 = sbr.rel (0) target = $region13
    $region12: #{tpu_custom_call.1} parent=1 // pred_region
      %24 = dma.done [#allocation4], 256
    $region13: #{tpu_custom_call.1} parent=1 // pred_fallthru
      _
    %s25 = sld [smem:[#allocation2]]
    %v26 = vld [vmem:[#allocation3] sm:$0xff]
    %v27 = vld [vmem:[#allocation3 + $0x8] sm:$0xff]
    %v28 = vstv %s25
    %v29 = vmul.f32 %v26, %v28
    %v30 = vmul.f32 %v27, %v28
    %31 = vst [vmem:[#allocation6] sm:$0xff] %v29
    %32 = vst [vmem:[#allocation6 + $0x8] sm:$0xff] %v30
    // Predicated region
    $region14: #{tpu_custom_call.1} parent=1 // pred_check
      _
    $region15: #{tpu_custom_call.1} parent=1 // pred_check_branch
      %34 = sbr.rel (0) target = $region17
    $region16: #{tpu_custom_call.1} parent=1 // pred_region
      %s36 = ssub.s32 256, 256
      %37 = vsyncadd [#allocation5], %s36
      %s39 = sshll.u32 [#allocation6], 4
      %s40 = int_to_ptr.vmem [resolvable:$true] %s39
      %42 = dma.vmem_to_hbm [thread:$0]  %s40, 256, %s2, [#allocation5]
    $region17: #{tpu_custom_call.1} parent=1 // pred_fallthru
      _
    // Predicated region
    $region18: #{tpu_custom_call.1} parent=1 // pred_check
      _
    $region19: #{tpu_custom_call.1} parent=1 // pred_check_branch
      %44 = sbr.rel (0) target = $region21
    $region20: #{tpu_custom_call.1} parent=1 // pred_region
      %45 = dma.done [#allocation5], 256
    $region21: #{tpu_custom_call.1} parent=1 // pred_fallthru
      _
    %46 = vsyncpa [#allocation4], 1
    %47 = vsyncpa [#allocation5], 1

</llo_original>
